<compile_context>
chip_gen: v6e
topology: v6e:2x2x1
jax: 0.10.0
libtpu: 0.0.40
codegen_flags: <defaults>
</compile_context>

<pallas_src>
import jax
import jax.numpy as jnp
from jax.experimental import pallas as pl
from jax.experimental.pallas import tpu as pltpu


def linear_kernel(x_ref, wt_ref, b_ref, o_ref):
    # x_ref: (TB, 16)  wt_ref: (16, 4)  b_ref: (1, 4)  o_ref: (TB, 4)
    y = jnp.dot(x_ref[...], wt_ref[...], preferred_element_type=jnp.float32)
    o_ref[...] = (y + b_ref[...]).astype(o_ref.dtype)


def net_forward(x, weight, bias, *, tb_max=65536):
    """Pallas forward for Net: y = x @ weight.T + bias (same semantics as nn.Linear)."""
    B, in_f = x.shape
    out_f, _ = weight.shape

    # Layout plumbing done once in the wrapper (free): pre-transposed weight, 2D bias.
    wt = weight.T                    # (in_f, out_f) = (16, 4)
    bias2d = bias.reshape(1, out_f)  # (1, 4)

    if B <= tb_max:
        tb = B        # single full-extent tile: always a legal block shape
    else:
        tb = tb_max   # multiple of 8; Pallas masks the partial last tile

    grid = (pl.cdiv(B, tb),)

    return pl.pallas_call(
        linear_kernel,
        out_shape=jax.ShapeDtypeStruct((B, out_f), x.dtype),
        grid_spec=pltpu.PrefetchScalarGridSpec(
            num_scalar_prefetch=0,
            grid=grid,
            in_specs=[
                # Batch-tiled, pipelined input.
                pl.BlockSpec((tb, in_f), lambda i: (i, 0)),
                # Grid-invariant weight/bias: fetched once, resident in VMEM.
                pl.BlockSpec((in_f, out_f), lambda i: (0, 0)),
                pl.BlockSpec((1, out_f), lambda i: (0, 0)),
            ],
            out_specs=pl.BlockSpec((tb, out_f), lambda i: (i, 0)),
        ),
        compiler_params=pltpu.CompilerParams(
            # Batch tiles are independent -> let v7x shard them across both TensorCores.
            dimension_semantics=("parallel",),
        ),
    )(x, wt, bias2d)


if __name__ == "__main__":
    key = jax.random.PRNGKey(0)
    k_x, k_w, k_b, k_x2 = jax.random.split(key, 4)

    B, IN, OUT = 8, 16, 4

    # Deterministic "PyTorch-style" init: U(-1/sqrt(in), 1/sqrt(in))
    bound = 1.0 / jnp.sqrt(jnp.float32(IN))
    weight = jax.random.uniform(k_w, (OUT, IN), jnp.float32, -bound, bound)
    bias = jax.random.uniform(k_b, (OUT,), jnp.float32, -bound, bound)

    # Small case (B=8): single full-extent tile.
    x = jax.random.normal(k_x, (B, IN), jnp.float32)
    y = jax.block_until_ready(net_forward(x, weight, bias))
    y_ref = x @ weight.T + bias
    assert y.shape == (B, OUT)
    assert jnp.allclose(y, y_ref, atol=1e-5, rtol=1e-5)

    # Exercise the tiled, multi-step "parallel" grid path (small TB to force grid > 1).
    B2 = 64
    x2 = jax.random.normal(k_x2, (B2, IN), jnp.float32)
    y2 = jax.block_until_ready(net_forward(x2, weight, bias, tb_max=16))
    y2_ref = x2 @ weight.T + bias
    assert y2.shape == (B2, OUT)
    assert jnp.allclose(y2, y2_ref, atol=1e-5, rtol=1e-5)

    print("KERNEL_OK")
</pallas_src>

<mosaic_0001>
module attributes {stable_mosaic.version = 11 : i64} {
  func.func @linear_kernel(%arg0: i32, %arg1: memref<8x16xf32, #tpu.memory_space<vmem>>, %arg2: memref<16x4xf32, #tpu.memory_space<vmem>>, %arg3: memref<1x4xf32, #tpu.memory_space<vmem>>, %arg4: memref<8x4xf32, #tpu.memory_space<vmem>>) attributes {dimension_semantics = [#tpu.dimension_semantics<parallel>], iteration_bounds = array<i64: 1>, scalar_prefetch = 0 : i64, scratch_operands = 0 : i64, tpu.core_type = #tpu.core_type<tc>, window_params = [{transform_indices = @transform_0, window_bounds = array<i64: 8, 16>}, {pipeline_mode = #tpu.pipeline_mode<synchronous>, transform_indices = @transform_1, window_bounds = array<i64: 16, 4>}, {pipeline_mode = #tpu.pipeline_mode<synchronous>, transform_indices = @transform_2, window_bounds = array<i64: 1, 4>}, {transform_indices = @transform_3, window_bounds = array<i64: 8, 4>}]} {
    %c0 = arith.constant 0 : index
    %c0_0 = arith.constant 0 : index
    %0 = vector.load %arg1[%c0, %c0_0] : memref<8x16xf32, #tpu.memory_space<vmem>>, vector<8x16xf32>
    %c0_1 = arith.constant 0 : index
    %c0_2 = arith.constant 0 : index
    %1 = vector.load %arg2[%c0_1, %c0_2] : memref<16x4xf32, #tpu.memory_space<vmem>>, vector<16x4xf32>
    %cst = arith.constant dense<0.000000e+00> : vector<8x4xf32>
    %2 = tpu.matmul %0, %1, %cst {dimension_numbers = #tpu.dot_dimension_numbers<[1], [0], [0], [1], [0, 0, 1, 1], [], []>} : vector<8x16xf32>, vector<16x4xf32>, vector<8x4xf32> -> vector<8x4xf32>
    %c0_3 = arith.constant 0 : index
    %c0_4 = arith.constant 0 : index
    %3 = vector.load %arg3[%c0_3, %c0_4] : memref<1x4xf32, #tpu.memory_space<vmem>>, vector<1x4xf32>
    %4 = vector.broadcast %3 : vector<1x4xf32> to vector<8x4xf32>
    %5 = arith.addf %2, %4 : vector<8x4xf32>
    %c0_5 = arith.constant 0 : index
    %c0_6 = arith.constant 0 : index
    %6 = vector.load %arg4[%c0_5, %c0_6] : memref<8x4xf32, #tpu.memory_space<vmem>>, vector<8x4xf32>
    tpu.vector_store %arg4[%c0_5, %c0_6], %5 {strides = array<i32>} : memref<8x4xf32, #tpu.memory_space<vmem>>, vector<8x4xf32>,
    return
  }
  func.func @transform_0(%arg0: i32) -> (i32, i32) {
    %c0_i32 = arith.constant 0 : i32
    %c0_i32_0 = arith.constant 0 : i32
    return %arg0, %c0_i32 : i32, i32
  }
  func.func @transform_1(%arg0: i32) -> (i32, i32) {
    %c0_i32 = arith.constant 0 : i32
    %c0_i32_0 = arith.constant 0 : i32
    %c0_i32_1 = arith.constant 0 : i32
    return %c0_i32, %c0_i32_0 : i32, i32
  }
  func.func @transform_2(%arg0: i32) -> (i32, i32) {
    %c0_i32 = arith.constant 0 : i32
    %c0_i32_0 = arith.constant 0 : i32
    %c0_i32_1 = arith.constant 0 : i32
    return %c0_i32, %c0_i32_0 : i32, i32
  }
  func.func @transform_3(%arg0: i32) -> (i32, i32) {
    %c0_i32 = arith.constant 0 : i32
    %c0_i32_0 = arith.constant 0 : i32
    return %arg0, %c0_i32 : i32, i32
  }
}

</mosaic_0001>

<llo_original>
// kernel: tpu_custom_call.1
$region0: #{tpu_custom_call.1}
  #allocation0 [shape = 'u32[]', space=smem, size = 0x4, offset = 0x4, fixed_abs, tag = 'smem constant byte address 0x4 - core index']
  #allocation1 [shape = 'u32[144,128]{1,0:T(1,128)}', space=vmem, size = 0x12000, scoped, tag = 'internal scratch']
  %s0 = inlined_call_operand.vmem [shape: f32[8,16], index: 0, kind: input, shape index: {}]
  %s1 = inlined_call_operand.vmem [shape: f32[16,4], index: 1, kind: input, shape index: {}]
  %s2 = inlined_call_operand.vmem [shape: f32[1,4], index: 2, kind: input, shape index: {}]
  %s3 = inlined_call_operand.vmem [shape: f32[8,4], index: 3, kind: output, shape index: {}]
  %s4 = sld [smem:[#allocation0]]
  $region22: #{tpu_custom_call.1} parent=0
    _
  %s6 = ssub.s32 1, %s4
  %s7 = scalar_select 0, %s6, %s4
  // Predicated region
  $region2: #{tpu_custom_call.1} parent=0 // pred_check
    _
  $region3: #{tpu_custom_call.1} parent=0 // pred_check_branch
    %9 = sbr.rel (0) target = $region5
  $region4: #{tpu_custom_call.1} parent=0 // pred_region
    _
  $region5: #{tpu_custom_call.1} parent=0 // pred_fallthru
    _
  // Predicated region
  $region6: #{tpu_custom_call.1} parent=0 // pred_check
    _
  $region7: #{tpu_custom_call.1} parent=0 // pred_check_branch
    %11 = sbr.rel (0) target = $region9
  $region8: #{tpu_custom_call.1} parent=0 // pred_region
    _
  $region9: #{tpu_custom_call.1} parent=0 // pred_fallthru
    _
  // Predicated region
  $region10: #{tpu_custom_call.1} parent=0 // pred_check
    _
  $region11: #{tpu_custom_call.1} parent=0 // pred_check_branch
    %13 = sbr.rel (0) target = $region13
  $region12: #{tpu_custom_call.1} parent=0 // pred_region
    _
  $region13: #{tpu_custom_call.1} parent=0 // pred_fallthru
    _
  %v14 = vld [vmem:[%s0] sm:$0xff]
  %v15 = vld [vmem:[%s1] sm:$0xff]
  %v16 = vld [vmem:[%s1 + $0x8] sm:$0xff]
  %v17 = vld [vmem:[%s2] sm:$0x1]
  %v19 = vlaneseq
  %v20 = vshrl.u32 %v19, 7
  %v21 = vsub.s32 0, %v20
  %v22 = vrot.slane %v17, %v21
  %vm24 = vcmask 130048
  %v26 = vsel %vm24, %v14, 0
  %28 = vmatprep.subr.mxu0 0.0
  %29 = vmatpush1.msra.mxu0 0.0
  %30 = vmatprep.subr.mxu0 0.0
  %31 = vmatpush1.msra.mxu0 0.0
  %32 = vmatprep.subr.mxu0 0.0
  %33 = vmatpush1.msra.mxu0 0.0
  %34 = vmatprep.subr.mxu0 0.0
  %35 = vmatpush1.msra.mxu0 0.0
  %36 = vmatprep.subr.mxu0 0.0
  %37 = vmatpush1.msra.mxu0 0.0
  %38 = vmatprep.subr.mxu0 0.0
  %39 = vmatpush1.msra.mxu0 0.0
  %40 = vmatprep.subr.mxu0 0.0
  %41 = vmatpush1.msra.mxu0 0.0
  %42 = vmatprep.subr.mxu0 0.0
  %43 = vmatpush1.msra.mxu0 0.0
  %44 = vmatprep.subr.mxu0 0.0
  %45 = vmatpush1.msra.mxu0 0.0
  %46 = vmatprep.subr.mxu0 0.0
  %47 = vmatpush1.msra.mxu0 0.0
  %48 = vmatprep.subr.mxu0 0.0
  %49 = vmatpush1.msra.mxu0 0.0
  %50 = vmatprep.subr.mxu0 0.0
  %51 = vmatpush1.msra.mxu0 0.0
  %52 = vmatprep.subr.mxu0 0.0
  %53 = vmatpush1.msra.mxu0 0.0
  %54 = vmatprep.subr.mxu0 0.0
  %55 = vmatpush1.msra.mxu0 0.0
  %56 = vmatprep.subr.mxu0 0.0
  %57 = vmatpush1.msra.mxu0 %v16
  %58 = vmatprep.subr.mxu0 0.0
  %59 = vmatpush1.msra.mxu0 %v15
  %60 = vmatprep.subr.mxu0 0.0
  %61 = vmatpush2.msra.mxu0 0.0
  %62 = vmatprep.subr.mxu0 0.0
  %63 = vmatpush2.msra.mxu0 0.0
  %64 = vmatprep.subr.mxu0 0.0
  %65 = vmatpush2.msra.mxu0 0.0
  %66 = vmatprep.subr.mxu0 0.0
  %67 = vmatpush2.msra.mxu0 0.0
  %68 = vmatprep.subr.mxu0 0.0
  %69 = vmatpush2.msra.mxu0 0.0
  %70 = vmatprep.subr.mxu0 0.0
  %71 = vmatpush2.msra.mxu0 0.0
  %72 = vmatprep.subr.mxu0 0.0
  %73 = vmatpush2.msra.mxu0 0.0
  %74 = vmatprep.subr.mxu0 0.0
  %75 = vmatpush2.msra.mxu0 0.0
  %76 = vmatprep.subr.mxu0 0.0
  %77 = vmatpush2.msra.mxu0 0.0
  %78 = vmatprep.subr.mxu0 0.0
  %79 = vmatpush2.msra.mxu0 0.0
  %80 = vmatprep.subr.mxu0 0.0
  %81 = vmatpush2.msra.mxu0 0.0
  %82 = vmatprep.subr.mxu0 0.0
  %83 = vmatpush2.msra.mxu0 0.0
  %84 = vmatprep.subr.mxu0 0.0
  %85 = vmatpush2.msra.mxu0 0.0
  %86 = vmatprep.subr.mxu0 0.0
  %87 = vmatpush2.msra.mxu0 0.0
  %88 = vmatprep.subr.mxu0 0.0
  %89 = vmatpush2.msra.mxu0 0.0
  %90 = vmatprep.subr.mxu0 0.0
  %91 = vmatpush2.msra.mxu0 0.0
  %92 = vmatprep.mubr.f32.mxu0 0.0
  %93 = vmatmul.mubr.f32.gmra.mxu0 %v26
  %v94 = vpop.f32.mrf.mxu0
  %v95 = vadd.f32 %v22, %v94
  %v96 = vpop.f32.mrf.mxu0
  %97 = vdwg.mxu0
  %vm98 = vcmask 31744
  %99 = vst.msk [vmem:[%s3] sm:$0xff] %vm98, %v95
  // Predicated region
  $region14: #{tpu_custom_call.1} parent=0 // pred_check
    _
  $region15: #{tpu_custom_call.1} parent=0 // pred_check_branch
    %101 = sbr.rel (0) target = $region17
  $region16: #{tpu_custom_call.1} parent=0 // pred_region
    _
  $region17: #{tpu_custom_call.1} parent=0 // pred_fallthru
    _
  // Predicated region
  $region18: #{tpu_custom_call.1} parent=0 // pred_check
    _
  $region19: #{tpu_custom_call.1} parent=0 // pred_check_branch
    %103 = sbr.rel (0) target = $region21
  $region20: #{tpu_custom_call.1} parent=0 // pred_region
    _
  $region21: #{tpu_custom_call.1} parent=0 // pred_fallthru
    _

</llo_original>
